<compile_context>
chip_gen: v7x
topology: tpu7x:2x2x1
jax: 0.10.0
libtpu: 0.0.40
codegen_flags: <defaults>
</compile_context>

<pallas_src>
import functools

import jax
import jax.numpy as jnp
from jax import lax
from jax.experimental import pallas as pl
from jax.experimental.pallas import tpu as pltpu


def _quat_prod_kernel(packed_ref, out_ref, *, defer_norm):
    # packed_ref: (8, TR, TC) f32 -- component slabs [a, b, c, d, e, f, g, h].
    # out_ref:    (4, TR, TC) f32 -- component slabs [s, v1, v2, v3].
    a = packed_ref[0]
    b = packed_ref[1]
    c = packed_ref[2]
    d = packed_ref[3]
    e = packed_ref[4]
    f = packed_ref[5]
    g = packed_ref[6]
    h = packed_ref[7]

    ss1 = a * a + b * b + c * c + d * d
    ss2 = e * e + f * f + g * g + h * h

    if defer_norm:
        # One rsqrt, scale the outputs (v7x micro-opt; slightly different
        # Inf/NaN behaviour for degenerate rows than the reference).
        inv = lax.rsqrt(ss1 * ss2)
        out_ref[0] = (a * e - b * f - c * g - d * h) * inv
        out_ref[1] = (b * e + a * f + c * h - d * g) * inv
        out_ref[2] = (c * e + a * g + d * f - b * h) * inv
        out_ref[3] = (d * e + a * h + b * g - c * f) * inv
    else:
        inv1 = lax.rsqrt(ss1)
        inv2 = lax.rsqrt(ss2)
        a, b, c, d = a * inv1, b * inv1, c * inv1, d * inv1
        e, f, g, h = e * inv2, f * inv2, g * inv2, h * inv2
        out_ref[0] = a * e - b * f - c * g - d * h
        out_ref[1] = b * e + a * f + c * h - d * g
        out_ref[2] = c * e + a * g + d * f - b * h
        out_ref[3] = d * e + a * h + b * g - c * f


def _choose_layout(n, *, lane=512, tr_cap=256):
    """Pick (lane, rows, tile_rows) for the (8, rows, lane) component slabs.

    rows is a multiple of tile_rows, tile_rows a multiple of 8, lane a
    multiple of 128.  Once the problem is big enough to split, aim for an
    even number of grid steps (v7x megacore balance)."""
    lane = max(128, (int(lane) // 128) * 128)
    tr_cap = max(8, (int(tr_cap) // 8) * 8)
    rows_needed = max(8, pl.cdiv(pl.cdiv(max(n, 1), lane), 8) * 8)
    if rows_needed <= 16:
        return lane, rows_needed, rows_needed          # tiny: single step
    tr = min(tr_cap, pl.cdiv(pl.cdiv(rows_needed, 2), 8) * 8)
    steps = pl.cdiv(rows_needed, tr)
    if steps % 2 == 1:
        steps += 1                                     # even grid for 2 TCs
    return lane, steps * tr, tr


def quaternion_prod(q1, q2, *, lane=512, tile_rows=256, defer_norm=False):
    """Pallas implementation of QuaternionProd.forward.

    q1, q2: arrays reshapeable to [N, 4]. Returns float32 [N, 4].
    `lane` (multiple of 128) and `tile_rows` (multiple of 8) set the per-step
    (tile_rows, lane) component-slab tile; defaults give ~6 MB/step.
    """
    q1 = jnp.asarray(q1, jnp.float32).reshape(-1, 4)
    q2 = jnp.asarray(q2, jnp.float32).reshape(-1, 4)
    n = q1.shape[0]

    lane, rows, tr = _choose_layout(n, lane=lane, tr_cap=tile_rows)
    n_pad = rows * lane
    grid = rows // tr

    # Single concat + pad + transpose into the component-major packed layout.
    # Padding rows are all-ones so their (discarded) normalization is finite.
    q = jnp.concatenate([q1, q2], axis=1)                          # (N, 8)
    q = jnp.pad(q, ((0, n_pad - n), (0, 0)), constant_values=1.0)  # (n_pad, 8)
    packed = q.T.reshape(8, rows, lane)                            # (8,rows,lane)

    cost = pl.CostEstimate(
        flops=50 * n_pad,            # ~50 VPU flops / quaternion
        transcendentals=2 * n_pad,   # <=2 rsqrt / quaternion
        bytes_accessed=48 * n_pad,   # 32 B in + 16 B out / quaternion
    )

    out4 = pl.pallas_call(
        functools.partial(_quat_prod_kernel, defer_norm=defer_norm),
        out_shape=jax.ShapeDtypeStruct((4, rows, lane), jnp.float32),
        grid_spec=pltpu.PrefetchScalarGridSpec(
            num_scalar_prefetch=0,
            grid=(grid,),
            in_specs=[pl.BlockSpec((8, tr, lane), lambda i: (0, i, 0))],
            out_specs=pl.BlockSpec((4, tr, lane), lambda i: (0, i, 0)),
        ),
        compiler_params=pltpu.CompilerParams(
            dimension_semantics=("parallel",)),
        cost_estimate=cost,
    )(packed)

    # Unpack back to the PyTorch [N, 4] contract.
    return out4.reshape(4, n_pad).T[:n]


def _reference(q1, q2):
    q1 = jnp.asarray(q1, jnp.float32).reshape(-1, 4)
    q2 = jnp.asarray(q2, jnp.float32).reshape(-1, 4)
    q1 = q1 / jnp.linalg.norm(q1, axis=1, keepdims=True)
    q2 = q2 / jnp.linalg.norm(q2, axis=1, keepdims=True)
    a, b, c, d = [q1[:, i:i + 1] for i in range(4)]
    e, f, g, h = [q2[:, i:i + 1] for i in range(4)]
    s  = a * e - b * f - c * g - d * h
    v1 = b * e + a * f + c * h - d * g
    v2 = c * e + a * g + d * f - b * h
    v3 = d * e + a * h + b * g - c * f
    return jnp.concatenate([s, v1, v2, v3], axis=1)


if __name__ == "__main__":
    key = jax.random.PRNGKey(0)
    k1, k2, k3, k4 = jax.random.split(key, 4)

    # Small [N, 4] batch, consistent with the module contract.
    N = 8
    q1 = jax.random.normal(k1, (N, 4), jnp.float32)
    q2 = jax.random.normal(k2, (N, 4), jnp.float32)
    out = jax.block_until_ready(quaternion_prod(q1, q2))
    ref = _reference(q1, q2)
    assert out.shape == (N, 4)
    assert jnp.allclose(out, ref, atol=1e-5, rtol=1e-5)

    # Second check: exercises padding and a multi-step (even) grid.
    N2 = 3000
    r1 = jax.random.normal(k3, (N2, 4), jnp.float32)
    r2 = jax.random.normal(k4, (N2, 4), jnp.float32)
    out2 = jax.block_until_ready(
        quaternion_prod(r1, r2, lane=128, tile_rows=8))
    ref2 = _reference(r1, r2)
    assert out2.shape == (N2, 4)
    assert jnp.allclose(out2, ref2, atol=1e-5, rtol=1e-5)

    # Third check: opt-in deferred-normalization path (v7x micro-opt).
    out3 = jax.block_until_ready(quaternion_prod(r1, r2, defer_norm=True))
    assert jnp.allclose(out3, ref2, atol=1e-5, rtol=1e-5)

    print("KERNEL_OK")
</pallas_src>

<mosaic_0001>
module attributes {stable_mosaic.version = 11 : i64} {
  func.func @_quat_prod_kernel(%arg0: i32, %arg1: memref<8x8x512xf32, #tpu.memory_space<vmem>>, %arg2: memref<4x8x512xf32, #tpu.memory_space<vmem>>) attributes {dimension_semantics = [#tpu.dimension_semantics<parallel>], iteration_bounds = array<i64: 1>, scalar_prefetch = 0 : i64, scratch_operands = 0 : i64, tpu.core_type = #tpu.core_type<tc>, window_params = [{transform_indices = @transform_0, window_bounds = array<i64: 8, 8, 512>}, {transform_indices = @transform_1, window_bounds = array<i64: 4, 8, 512>}]} {
    %c0 = arith.constant 0 : index
    %c0_0 = arith.constant 0 : index
    %c0_1 = arith.constant 0 : index
    %0 = vector.load %arg1[%c0, %c0_0, %c0_1] : memref<8x8x512xf32, #tpu.memory_space<vmem>>, vector<1x8x512xf32>
    %1 = vector.shape_cast %0 : vector<1x8x512xf32> to vector<8x512xf32>
    %c1 = arith.constant 1 : index
    %c0_2 = arith.constant 0 : index
    %c0_3 = arith.constant 0 : index
    %2 = vector.load %arg1[%c1, %c0_2, %c0_3] : memref<8x8x512xf32, #tpu.memory_space<vmem>>, vector<1x8x512xf32>
    %3 = vector.shape_cast %2 : vector<1x8x512xf32> to vector<8x512xf32>
    %c2 = arith.constant 2 : index
    %c0_4 = arith.constant 0 : index
    %c0_5 = arith.constant 0 : index
    %4 = vector.load %arg1[%c2, %c0_4, %c0_5] : memref<8x8x512xf32, #tpu.memory_space<vmem>>, vector<1x8x512xf32>
    %5 = vector.shape_cast %4 : vector<1x8x512xf32> to vector<8x512xf32>
    %c3 = arith.constant 3 : index
    %c0_6 = arith.constant 0 : index
    %c0_7 = arith.constant 0 : index
    %6 = vector.load %arg1[%c3, %c0_6, %c0_7] : memref<8x8x512xf32, #tpu.memory_space<vmem>>, vector<1x8x512xf32>
    %7 = vector.shape_cast %6 : vector<1x8x512xf32> to vector<8x512xf32>
    %c4 = arith.constant 4 : index
    %c0_8 = arith.constant 0 : index
    %c0_9 = arith.constant 0 : index
    %8 = vector.load %arg1[%c4, %c0_8, %c0_9] : memref<8x8x512xf32, #tpu.memory_space<vmem>>, vector<1x8x512xf32>
    %9 = vector.shape_cast %8 : vector<1x8x512xf32> to vector<8x512xf32>
    %c5 = arith.constant 5 : index
    %c0_10 = arith.constant 0 : index
    %c0_11 = arith.constant 0 : index
    %10 = vector.load %arg1[%c5, %c0_10, %c0_11] : memref<8x8x512xf32, #tpu.memory_space<vmem>>, vector<1x8x512xf32>
    %11 = vector.shape_cast %10 : vector<1x8x512xf32> to vector<8x512xf32>
    %c6 = arith.constant 6 : index
    %c0_12 = arith.constant 0 : index
    %c0_13 = arith.constant 0 : index
    %12 = vector.load %arg1[%c6, %c0_12, %c0_13] : memref<8x8x512xf32, #tpu.memory_space<vmem>>, vector<1x8x512xf32>
    %13 = vector.shape_cast %12 : vector<1x8x512xf32> to vector<8x512xf32>
    %c7 = arith.constant 7 : index
    %c0_14 = arith.constant 0 : index
    %c0_15 = arith.constant 0 : index
    %14 = vector.load %arg1[%c7, %c0_14, %c0_15] : memref<8x8x512xf32, #tpu.memory_space<vmem>>, vector<1x8x512xf32>
    %15 = vector.shape_cast %14 : vector<1x8x512xf32> to vector<8x512xf32>
    %16 = arith.mulf %1, %1 : vector<8x512xf32>
    %17 = arith.mulf %3, %3 : vector<8x512xf32>
    %18 = arith.addf %16, %17 : vector<8x512xf32>
    %19 = arith.mulf %5, %5 : vector<8x512xf32>
    %20 = arith.addf %18, %19 : vector<8x512xf32>
    %21 = arith.mulf %7, %7 : vector<8x512xf32>
    %22 = arith.addf %20, %21 : vector<8x512xf32>
    %23 = arith.mulf %9, %9 : vector<8x512xf32>
    %24 = arith.mulf %11, %11 : vector<8x512xf32>
    %25 = arith.addf %23, %24 : vector<8x512xf32>
    %26 = arith.mulf %13, %13 : vector<8x512xf32>
    %27 = arith.addf %25, %26 : vector<8x512xf32>
    %28 = arith.mulf %15, %15 : vector<8x512xf32>
    %29 = arith.addf %27, %28 : vector<8x512xf32>
    %30 = math.rsqrt %22 : vector<8x512xf32>
    %31 = math.rsqrt %29 : vector<8x512xf32>
    %32 = arith.mulf %1, %30 : vector<8x512xf32>
    %33 = arith.mulf %3, %30 : vector<8x512xf32>
    %34 = arith.mulf %5, %30 : vector<8x512xf32>
    %35 = arith.mulf %7, %30 : vector<8x512xf32>
    %36 = arith.mulf %9, %31 : vector<8x512xf32>
    %37 = arith.mulf %11, %31 : vector<8x512xf32>
    %38 = arith.mulf %13, %31 : vector<8x512xf32>
    %39 = arith.mulf %15, %31 : vector<8x512xf32>
    %40 = arith.mulf %32, %36 : vector<8x512xf32>
    %41 = arith.mulf %33, %37 : vector<8x512xf32>
    %42 = arith.subf %40, %41 : vector<8x512xf32>
    %43 = arith.mulf %34, %38 : vector<8x512xf32>
    %44 = arith.subf %42, %43 : vector<8x512xf32>
    %45 = arith.mulf %35, %39 : vector<8x512xf32>
    %46 = arith.subf %44, %45 : vector<8x512xf32>
    %c0_16 = arith.constant 0 : index
    %c0_17 = arith.constant 0 : index
    %c0_18 = arith.constant 0 : index
    %47 = vector.load %arg2[%c0_16, %c0_17, %c0_18] : memref<4x8x512xf32, #tpu.memory_space<vmem>>, vector<1x8x512xf32>
    %48 = vector.shape_cast %47 : vector<1x8x512xf32> to vector<8x512xf32>
    %49 = vector.shape_cast %46 : vector<8x512xf32> to vector<1x8x512xf32>
    tpu.vector_store %arg2[%c0_16, %c0_17, %c0_18], %49 {strides = array<i32>} : memref<4x8x512xf32, #tpu.memory_space<vmem>>, vector<1x8x512xf32>,
    %50 = arith.mulf %33, %36 : vector<8x512xf32>
    %51 = arith.mulf %32, %37 : vector<8x512xf32>
    %52 = arith.addf %50, %51 : vector<8x512xf32>
    %53 = arith.mulf %34, %39 : vector<8x512xf32>
    %54 = arith.addf %52, %53 : vector<8x512xf32>
    %55 = arith.mulf %35, %38 : vector<8x512xf32>
    %56 = arith.subf %54, %55 : vector<8x512xf32>
    %c1_19 = arith.constant 1 : index
    %c0_20 = arith.constant 0 : index
    %c0_21 = arith.constant 0 : index
    %57 = vector.load %arg2[%c1_19, %c0_20, %c0_21] : memref<4x8x512xf32, #tpu.memory_space<vmem>>, vector<1x8x512xf32>
    %58 = vector.shape_cast %57 : vector<1x8x512xf32> to vector<8x512xf32>
    %59 = vector.shape_cast %56 : vector<8x512xf32> to vector<1x8x512xf32>
    tpu.vector_store %arg2[%c1_19, %c0_20, %c0_21], %59 {strides = array<i32>} : memref<4x8x512xf32, #tpu.memory_space<vmem>>, vector<1x8x512xf32>,
    %60 = arith.mulf %34, %36 : vector<8x512xf32>
    %61 = arith.mulf %32, %38 : vector<8x512xf32>
    %62 = arith.addf %60, %61 : vector<8x512xf32>
    %63 = arith.mulf %35, %37 : vector<8x512xf32>
    %64 = arith.addf %62, %63 : vector<8x512xf32>
    %65 = arith.mulf %33, %39 : vector<8x512xf32>
    %66 = arith.subf %64, %65 : vector<8x512xf32>
    %c2_22 = arith.constant 2 : index
    %c0_23 = arith.constant 0 : index
    %c0_24 = arith.constant 0 : index
    %67 = vector.load %arg2[%c2_22, %c0_23, %c0_24] : memref<4x8x512xf32, #tpu.memory_space<vmem>>, vector<1x8x512xf32>
    %68 = vector.shape_cast %67 : vector<1x8x512xf32> to vector<8x512xf32>
    %69 = vector.shape_cast %66 : vector<8x512xf32> to vector<1x8x512xf32>
    tpu.vector_store %arg2[%c2_22, %c0_23, %c0_24], %69 {strides = array<i32>} : memref<4x8x512xf32, #tpu.memory_space<vmem>>, vector<1x8x512xf32>,
    %70 = arith.mulf %35, %36 : vector<8x512xf32>
    %71 = arith.mulf %32, %39 : vector<8x512xf32>
    %72 = arith.addf %70, %71 : vector<8x512xf32>
    %73 = arith.mulf %33, %38 : vector<8x512xf32>
    %74 = arith.addf %72, %73 : vector<8x512xf32>
    %75 = arith.mulf %34, %37 : vector<8x512xf32>
    %76 = arith.subf %74, %75 : vector<8x512xf32>
    %c3_25 = arith.constant 3 : index
    %c0_26 = arith.constant 0 : index
    %c0_27 = arith.constant 0 : index
    %77 = vector.load %arg2[%c3_25, %c0_26, %c0_27] : memref<4x8x512xf32, #tpu.memory_space<vmem>>, vector<1x8x512xf32>
    %78 = vector.shape_cast %77 : vector<1x8x512xf32> to vector<8x512xf32>
    %79 = vector.shape_cast %76 : vector<8x512xf32> to vector<1x8x512xf32>
    tpu.vector_store %arg2[%c3_25, %c0_26, %c0_27], %79 {strides = array<i32>} : memref<4x8x512xf32, #tpu.memory_space<vmem>>, vector<1x8x512xf32>,
    return
  }
  func.func @transform_0(%arg0: i32) -> (i32, i32, i32) {
    %c0_i32 = arith.constant 0 : i32
    %c0_i32_0 = arith.constant 0 : i32
    %c0_i32_1 = arith.constant 0 : i32
    return %c0_i32, %arg0, %c0_i32_0 : i32, i32, i32
  }
  func.func @transform_1(%arg0: i32) -> (i32, i32, i32) {
    %c0_i32 = arith.constant 0 : i32
    %c0_i32_0 = arith.constant 0 : i32
    %c0_i32_1 = arith.constant 0 : i32
    return %c0_i32, %arg0, %c0_i32_0 : i32, i32, i32
  }
}

</mosaic_0001>

<llo_original>
// kernel: tpu_custom_call.1
$region0: #{tpu_custom_call.1}
  #allocation0 [shape = 'u32[]', space=smem, size = 0x4, offset = 0x4, fixed_abs, tag = 'smem constant byte address 0x4 - core index']
  #allocation1 [shape = 'u32[144,128]{1,0:T(1,128)}', space=vmem, size = 0x12000, scoped, tag = 'internal scratch']
  %s0 = inlined_call_operand.hbm [shape: f32[8,8,512], index: 0, kind: input, shape index: {}]
  %s1 = inlined_call_operand.hbm [shape: f32[4,8,512], index: 1, kind: output, shape index: {}]
  %s2 = sld [smem:[#allocation0]]
  $region18: #{tpu_custom_call.1} parent=0
    _
  %s4 = ssub.s32 1, %s2
  %s5 = scalar_select 0, %s4, %s2
  $region1: #{tpu_custom_call.1} parent=0
    #allocation2 [shape = 'u8[131072]{0}', space=vmem, size = 0x20000, scoped, tag = 'input window, operand 0, single buffered']
    #allocation3 [shape = 's32[1]{0}', space=sflag, size = 0x4, scoped, tag = 'scoped memory for tpu_custom_call.1']
    #allocation4 [shape = 's32[1]{0}', space=sflag, size = 0x4, scoped, tag = 'scoped memory for tpu_custom_call.1']
    #allocation5 [shape = 'u8[65536]{0}', space=vmem, size = 0x10000, scoped, tag = 'output window, operand 0, single buffered']
    %6 = vsyncpa [#allocation3], 0
    %7 = vsyncpa [#allocation4], 0
    // Predicated region
    $region2: #{tpu_custom_call.1} parent=1 // pred_check
      _
    $region3: #{tpu_custom_call.1} parent=1 // pred_check_branch
      %9 = sbr.rel (0) target = $region5
    $region4: #{tpu_custom_call.1} parent=1 // pred_region
      %s11 = ssub.s32 4096, 4096
      %12 = vsyncadd [#allocation3], %s11
      %s13 = sshll.u32 [#allocation2], 4
      %s14 = int_to_ptr.vmem [resolvable:$true] %s13
      %19 = dma.hbm_to_vmem [thread:$0]  %s0, 4096, %s14, [#allocation3], 512, 512, 32
    $region5: #{tpu_custom_call.1} parent=1 // pred_fallthru
      _
    // Predicated region
    $region6: #{tpu_custom_call.1} parent=1 // pred_check
      _
    $region7: #{tpu_custom_call.1} parent=1 // pred_check_branch
      %21 = sbr.rel (0) target = $region9
    $region8: #{tpu_custom_call.1} parent=1 // pred_region
      %22 = dma.done [#allocation3], 4096
    $region9: #{tpu_custom_call.1} parent=1 // pred_fallthru
      _
    %v23 = vld [vmem:[#allocation2] sm:$0xff]
    %v24 = vld [vmem:[#allocation2 + $0x8] sm:$0xff]
    %v25 = vld [vmem:[#allocation2 + $0x10] sm:$0xff]
    %v26 = vld [vmem:[#allocation2 + $0x18] sm:$0xff]
    %s27 = scalar_lea.vmem [#allocation2], 32
    %v28 = vld [vmem:[%s27] sm:$0xff]
    %v29 = vld [vmem:[%s27 + $0x8] sm:$0xff]
    %v30 = vld [vmem:[%s27 + $0x10] sm:$0xff]
    %v31 = vld [vmem:[%s27 + $0x18] sm:$0xff]
    %s32 = scalar_lea.vmem [#allocation2], 64
    %v33 = vld [vmem:[%s32] sm:$0xff]
    %v34 = vld [vmem:[%s32 + $0x8] sm:$0xff]
    %v35 = vld [vmem:[%s32 + $0x10] sm:$0xff]
    %v36 = vld [vmem:[%s32 + $0x18] sm:$0xff]
    %s37 = scalar_lea.vmem [#allocation2], 96
    %v38 = vld [vmem:[%s37] sm:$0xff]
    %v39 = vld [vmem:[%s37 + $0x8] sm:$0xff]
    %v40 = vld [vmem:[%s37 + $0x10] sm:$0xff]
    %v41 = vld [vmem:[%s37 + $0x18] sm:$0xff]
    %s42 = scalar_lea.vmem [#allocation2], 128
    %v43 = vld [vmem:[%s42] sm:$0xff]
    %v44 = vld [vmem:[%s42 + $0x8] sm:$0xff]
    %v45 = vld [vmem:[%s42 + $0x10] sm:$0xff]
    %v46 = vld [vmem:[%s42 + $0x18] sm:$0xff]
    %s47 = scalar_lea.vmem [#allocation2], 160
    %v48 = vld [vmem:[%s47] sm:$0xff]
    %v49 = vld [vmem:[%s47 + $0x8] sm:$0xff]
    %v50 = vld [vmem:[%s47 + $0x10] sm:$0xff]
    %v51 = vld [vmem:[%s47 + $0x18] sm:$0xff]
    %s52 = scalar_lea.vmem [#allocation2], 192
    %v53 = vld [vmem:[%s52] sm:$0xff]
    %v54 = vld [vmem:[%s52 + $0x8] sm:$0xff]
    %v55 = vld [vmem:[%s52 + $0x10] sm:$0xff]
    %v56 = vld [vmem:[%s52 + $0x18] sm:$0xff]
    %s57 = scalar_lea.vmem [#allocation2], 224
    %v58 = vld [vmem:[%s57] sm:$0xff]
    %v59 = vld [vmem:[%s57 + $0x8] sm:$0xff]
    %v60 = vld [vmem:[%s57 + $0x10] sm:$0xff]
    %v61 = vld [vmem:[%s57 + $0x18] sm:$0xff]
    %v62 = vmul.f32 %v23, %v23
    %v63 = vmul.f32 %v24, %v24
    %v64 = vmul.f32 %v25, %v25
    %v65 = vmul.f32 %v26, %v26
    %v66 = vmul.f32 %v28, %v28
    %v67 = vmul.f32 %v29, %v29
    %v68 = vmul.f32 %v30, %v30
    %v69 = vmul.f32 %v31, %v31
    %v70 = vadd.f32 %v62, %v66
    %v71 = vadd.f32 %v63, %v67
    %v72 = vadd.f32 %v64, %v68
    %v73 = vadd.f32 %v65, %v69
    %v74 = vmul.f32 %v33, %v33
    %v75 = vmul.f32 %v34, %v34
    %v76 = vmul.f32 %v35, %v35
    %v77 = vmul.f32 %v36, %v36
    %v78 = vadd.f32 %v70, %v74
    %v79 = vadd.f32 %v71, %v75
    %v80 = vadd.f32 %v72, %v76
    %v81 = vadd.f32 %v73, %v77
    %v82 = vmul.f32 %v38, %v38
    %v83 = vmul.f32 %v39, %v39
    %v84 = vmul.f32 %v40, %v40
    %v85 = vmul.f32 %v41, %v41
    %v86 = vadd.f32 %v78, %v82
    %v87 = vadd.f32 %v79, %v83
    %v88 = vadd.f32 %v80, %v84
    %v89 = vadd.f32 %v81, %v85
    %v90 = vmul.f32 %v43, %v43
    %v91 = vmul.f32 %v44, %v44
    %v92 = vmul.f32 %v45, %v45
    %v93 = vmul.f32 %v46, %v46
    %v94 = vmul.f32 %v48, %v48
    %v95 = vmul.f32 %v49, %v49
    %v96 = vmul.f32 %v50, %v50
    %v97 = vmul.f32 %v51, %v51
    %v98 = vadd.f32 %v90, %v94
    %v99 = vadd.f32 %v91, %v95
    %v100 = vadd.f32 %v92, %v96
    %v101 = vadd.f32 %v93, %v97
    %v102 = vmul.f32 %v53, %v53
    %v103 = vmul.f32 %v54, %v54
    %v104 = vmul.f32 %v55, %v55
    %v105 = vmul.f32 %v56, %v56
    %v106 = vadd.f32 %v98, %v102
    %v107 = vadd.f32 %v99, %v103
    %v108 = vadd.f32 %v100, %v104
    %v109 = vadd.f32 %v101, %v105
    %v110 = vmul.f32 %v58, %v58
    %v111 = vmul.f32 %v59, %v59
    %v112 = vmul.f32 %v60, %v60
    %v113 = vmul.f32 %v61, %v61
    %v114 = vadd.f32 %v106, %v110
    %v115 = vadd.f32 %v107, %v111
    %v116 = vadd.f32 %v108, %v112
    %v117 = vadd.f32 %v109, %v113
    %v118 = vrsqrt.pop %v86
    %v119 = vrsqrt.pop %v87
    %v120 = vrsqrt.pop %v88
    %v121 = vrsqrt.pop %v89
    %v122 = vrsqrt.pop %v114
    %v123 = vrsqrt.pop %v115
    %v124 = vrsqrt.pop %v116
    %v125 = vrsqrt.pop %v117
    %v126 = vmul.f32 %v23, %v118
    %v127 = vmul.f32 %v24, %v119
    %v128 = vmul.f32 %v25, %v120
    %v129 = vmul.f32 %v26, %v121
    %v130 = vmul.f32 %v28, %v118
    %v131 = vmul.f32 %v29, %v119
    %v132 = vmul.f32 %v30, %v120
    %v133 = vmul.f32 %v31, %v121
    %v134 = vmul.f32 %v33, %v118
    %v135 = vmul.f32 %v34, %v119
    %v136 = vmul.f32 %v35, %v120
    %v137 = vmul.f32 %v36, %v121
    %v138 = vmul.f32 %v38, %v118
    %v139 = vmul.f32 %v39, %v119
    %v140 = vmul.f32 %v40, %v120
    %v141 = vmul.f32 %v41, %v121
    %v142 = vmul.f32 %v43, %v122
    %v143 = vmul.f32 %v44, %v123
    %v144 = vmul.f32 %v45, %v124
    %v145 = vmul.f32 %v46, %v125
    %v146 = vmul.f32 %v48, %v122
    %v147 = vmul.f32 %v49, %v123
    %v148 = vmul.f32 %v50, %v124
    %v149 = vmul.f32 %v51, %v125
    %v150 = vmul.f32 %v53, %v122
    %v151 = vmul.f32 %v54, %v123
    %v152 = vmul.f32 %v55, %v124
    %v153 = vmul.f32 %v56, %v125
    %v154 = vmul.f32 %v58, %v122
    %v155 = vmul.f32 %v59, %v123
    %v156 = vmul.f32 %v60, %v124
    %v157 = vmul.f32 %v61, %v125
    %v158 = vmul.f32 %v126, %v142
    %v159 = vmul.f32 %v127, %v143
    %v160 = vmul.f32 %v128, %v144
    %v161 = vmul.f32 %v129, %v145
    %v162 = vmul.f32 %v130, %v146
    %v163 = vmul.f32 %v131, %v147
    %v164 = vmul.f32 %v132, %v148
    %v165 = vmul.f32 %v133, %v149
    %v166 = vsub.f32 %v158, %v162
    %v167 = vsub.f32 %v159, %v163
    %v168 = vsub.f32 %v160, %v164
    %v169 = vsub.f32 %v161, %v165
    %v170 = vmul.f32 %v134, %v150
    %v171 = vmul.f32 %v135, %v151
    %v172 = vmul.f32 %v136, %v152
    %v173 = vmul.f32 %v137, %v153
    %v174 = vsub.f32 %v166, %v170
    %v175 = vsub.f32 %v167, %v171
    %v176 = vsub.f32 %v168, %v172
    %v177 = vsub.f32 %v169, %v173
    %v178 = vmul.f32 %v138, %v154
    %v179 = vmul.f32 %v139, %v155
    %v180 = vmul.f32 %v140, %v156
    %v181 = vmul.f32 %v141, %v157
    %v182 = vsub.f32 %v174, %v178
    %v183 = vsub.f32 %v175, %v179
    %v184 = vsub.f32 %v176, %v180
    %v185 = vsub.f32 %v177, %v181
    %186 = vst [vmem:[#allocation5] sm:$0xff] %v182
    %187 = vst [vmem:[#allocation5 + $0x8] sm:$0xff] %v183
    %188 = vst [vmem:[#allocation5 + $0x10] sm:$0xff] %v184
    %189 = vst [vmem:[#allocation5 + $0x18] sm:$0xff] %v185
    %v190 = vmul.f32 %v130, %v142
    %v191 = vmul.f32 %v131, %v143
    %v192 = vmul.f32 %v132, %v144
    %v193 = vmul.f32 %v133, %v145
    %v194 = vmul.f32 %v126, %v146
    %v195 = vmul.f32 %v127, %v147
    %v196 = vmul.f32 %v128, %v148
    %v197 = vmul.f32 %v129, %v149
    %v198 = vadd.f32 %v190, %v194
    %v199 = vadd.f32 %v191, %v195
    %v200 = vadd.f32 %v192, %v196
    %v201 = vadd.f32 %v193, %v197
    %v202 = vmul.f32 %v134, %v154
    %v203 = vmul.f32 %v135, %v155
    %v204 = vmul.f32 %v136, %v156
    %v205 = vmul.f32 %v137, %v157
    %v206 = vadd.f32 %v198, %v202
    %v207 = vadd.f32 %v199, %v203
    %v208 = vadd.f32 %v200, %v204
    %v209 = vadd.f32 %v201, %v205
    %v210 = vmul.f32 %v138, %v150
    %v211 = vmul.f32 %v139, %v151
    %v212 = vmul.f32 %v140, %v152
    %v213 = vmul.f32 %v141, %v153
    %v214 = vsub.f32 %v206, %v210
    %v215 = vsub.f32 %v207, %v211
    %v216 = vsub.f32 %v208, %v212
    %v217 = vsub.f32 %v209, %v213
    %s218 = scalar_lea.vmem [#allocation5], 32
    %219 = vst [vmem:[%s218] sm:$0xff] %v214
    %220 = vst [vmem:[%s218 + $0x8] sm:$0xff] %v215
    %221 = vst [vmem:[%s218 + $0x10] sm:$0xff] %v216
    %222 = vst [vmem:[%s218 + $0x18] sm:$0xff] %v217
    %v223 = vmul.f32 %v134, %v142
    %v224 = vmul.f32 %v135, %v143
    %v225 = vmul.f32 %v136, %v144
    %v226 = vmul.f32 %v137, %v145
    %v227 = vmul.f32 %v126, %v150
    %v228 = vmul.f32 %v127, %v151
    %v229 = vmul.f32 %v128, %v152
    %v230 = vmul.f32 %v129, %v153
    %v231 = vadd.f32 %v223, %v227
    %v232 = vadd.f32 %v224, %v228
    %v233 = vadd.f32 %v225, %v229
    %v234 = vadd.f32 %v226, %v230
    %v235 = vmul.f32 %v138, %v146
    %v236 = vmul.f32 %v139, %v147
    %v237 = vmul.f32 %v140, %v148
    %v238 = vmul.f32 %v141, %v149
    %v239 = vadd.f32 %v231, %v235
    %v240 = vadd.f32 %v232, %v236
    %v241 = vadd.f32 %v233, %v237
    %v242 = vadd.f32 %v234, %v238
    %v243 = vmul.f32 %v130, %v154
    %v244 = vmul.f32 %v131, %v155
    %v245 = vmul.f32 %v132, %v156
    %v246 = vmul.f32 %v133, %v157
    %v247 = vsub.f32 %v239, %v243
    %v248 = vsub.f32 %v240, %v244
    %v249 = vsub.f32 %v241, %v245
    %v250 = vsub.f32 %v242, %v246
    %s251 = scalar_lea.vmem [#allocation5], 64
    %252 = vst [vmem:[%s251] sm:$0xff] %v247
    %253 = vst [vmem:[%s251 + $0x8] sm:$0xff] %v248
    %254 = vst [vmem:[%s251 + $0x10] sm:$0xff] %v249
    %255 = vst [vmem:[%s251 + $0x18] sm:$0xff] %v250
    %v256 = vmul.f32 %v138, %v142
    %v257 = vmul.f32 %v139, %v143
    %v258 = vmul.f32 %v140, %v144
    %v259 = vmul.f32 %v141, %v145
    %v260 = vmul.f32 %v126, %v154
    %v261 = vmul.f32 %v127, %v155
    %v262 = vmul.f32 %v128, %v156
    %v263 = vmul.f32 %v129, %v157
    %v264 = vadd.f32 %v256, %v260
    %v265 = vadd.f32 %v257, %v261
    %v266 = vadd.f32 %v258, %v262
    %v267 = vadd.f32 %v259, %v263
    %v268 = vmul.f32 %v130, %v150
    %v269 = vmul.f32 %v131, %v151
    %v270 = vmul.f32 %v132, %v152
    %v271 = vmul.f32 %v133, %v153
    %v272 = vadd.f32 %v264, %v268
    %v273 = vadd.f32 %v265, %v269
    %v274 = vadd.f32 %v266, %v270
    %v275 = vadd.f32 %v267, %v271
    %v276 = vmul.f32 %v134, %v146
    %v277 = vmul.f32 %v135, %v147
    %v278 = vmul.f32 %v136, %v148
    %v279 = vmul.f32 %v137, %v149
    %v280 = vsub.f32 %v272, %v276
    %v281 = vsub.f32 %v273, %v277
    %v282 = vsub.f32 %v274, %v278
    %v283 = vsub.f32 %v275, %v279
    %s284 = scalar_lea.vmem [#allocation5], 96
    %285 = vst [vmem:[%s284] sm:$0xff] %v280
    %286 = vst [vmem:[%s284 + $0x8] sm:$0xff] %v281
    %287 = vst [vmem:[%s284 + $0x10] sm:$0xff] %v282
    %288 = vst [vmem:[%s284 + $0x18] sm:$0xff] %v283
    // Predicated region
    $region10: #{tpu_custom_call.1} parent=1 // pred_check
      _
    $region11: #{tpu_custom_call.1} parent=1 // pred_check_branch
      %290 = sbr.rel (0) target = $region13
    $region12: #{tpu_custom_call.1} parent=1 // pred_region
      %s292 = ssub.s32 2048, 2048
      %293 = vsyncadd [#allocation4], %s292
      %s294 = sshll.u32 [#allocation5], 4
      %s295 = int_to_ptr.vmem [resolvable:$true] %s294
      %300 = dma.vmem_to_hbm [thread:$0]  %s295, 2048, %s1, [#allocation4], 512, 512, 32
    $region13: #{tpu_custom_call.1} parent=1 // pred_fallthru
      _
    // Predicated region
    $region14: #{tpu_custom_call.1} parent=1 // pred_check
      _
    $region15: #{tpu_custom_call.1} parent=1 // pred_check_branch
      %302 = sbr.rel (0) target = $region17
    $region16: #{tpu_custom_call.1} parent=1 // pred_region
      %303 = dma.done [#allocation4], 2048
    $region17: #{tpu_custom_call.1} parent=1 // pred_fallthru
      _
    %304 = vsyncpa [#allocation3], 1
    %305 = vsyncpa [#allocation4], 1

</llo_original>
